<compile_context>
chip_gen: v5e
topology: v5e:2x2
jax: 0.10.0
libtpu: 0.0.40
codegen_flags: <defaults>
</compile_context>

<pallas_src>
import functools

import jax
import jax.numpy as jnp
from jax.experimental import pallas as pl
from jax.experimental.pallas import tpu as pltpu


# ----------------------------- configuration --------------------------------
# (stand-in for CNNConfig; vocab_size is unused because this module takes
#  pre-embedded inputs — there is no nn.Embedding in the reference forward)
class CNNConfig:
    num_filters = 8
    kernel_size = (3, 4, 5)
    dropout_rate = 0.5        # inference: dropout is identity
    emb_size = 32
    label_len = 2


def _round_up(n, m):
    return (n + m - 1) // m * m


# --------------------------------- kernel ------------------------------------
def _textcnn_kernel(x_ref, wconv_ref, bconv_ref, wfc_ref, bfc_ref, mask_ref,
                    out_ref, *, num_taps):
    """Fused im2col-conv -> bias -> ReLU -> masked global max-pool -> FC."""
    x = x_ref[...]                                   # (TB, L, E) f32
    TB, L, E = x.shape

    # ---- im2col window buffer, built once -----------------------------------
    # windows[b, t, k*E:(k+1)*E] = x[b, t+k, :]  (zeros once t+k >= L; those
    # positions are masked out before the max-pool anyway).
    if num_taps > 1:
        tail = jnp.zeros((TB, num_taps - 1, E), x.dtype)
        xp = jnp.concatenate([x, tail], axis=1)      # (TB, L+Kmax-1, E)
    else:
        xp = x
    windows = jnp.concatenate(
        [xp[:, k:k + L, :] for k in range(num_taps)], axis=-1)  # (TB, L, Kmax*E)

    # ---- one deep MXU contraction for all banks & taps -----------------------
    wconv = wconv_ref[...]                           # (Kmax*E, Fpad=128)
    KE, Fpad = wconv.shape
    y = jnp.dot(windows.reshape(TB * L, KE), wconv,
                preferred_element_type=jnp.float32)  # (TB*L, Fpad)
    y = jnp.maximum(y + bconv_ref[...], 0.0)         # bias + ReLU
    y = y.reshape(TB, L, Fpad)

    # ---- zero invalid (past-end) positions, then global max over time -------
    y = y * mask_ref[...][None, :, :]                # (L, Fpad) 0/1 mask
    feat = jnp.max(y, axis=1)                        # (TB, Fpad) — already the
                                                     # "concatenated" features

    # TODO(synk): dropout omitted (inference-mode identity).

    # ---- fully-connected head (lane-padded, dense store) ---------------------
    out = jnp.dot(feat, wfc_ref[...],
                  preferred_element_type=jnp.float32) + bfc_ref[...]
    out_ref[...] = out.astype(out_ref.dtype)         # (TB, 128) lane-dense store


# -------------------------------- wrapper ------------------------------------
def textcnn_forward(x, params, *, kernel_sizes, num_filters, label_len,
                    block_b=128, filt_pad=128, out_pad=128):
    """x: (B, L, E) float32; params: dict of weights (PyTorch layouts)."""
    B, L, E = x.shape
    F = num_filters
    nK = len(kernel_sizes)
    Kmax = max(kernel_sizes)
    assert L >= Kmax, "sequence must be at least as long as the widest kernel"
    assert nK * F <= filt_pad and label_len <= out_pad

    # ---- pack conv weights: per-bank (F, K, E) -> one (Kmax*E, 128) RHS ------
    # Column block j holds bank j's filters; rows [k*E:(k+1)*E] hold tap k as a
    # contiguous (E, F) tile; taps a bank lacks stay zero.
    wconv = jnp.zeros((Kmax * E, filt_pad), jnp.float32)
    bconv = jnp.zeros((1, filt_pad), jnp.float32)
    mask = jnp.zeros((L, filt_pad), jnp.float32)
    t_idx = jnp.arange(L)[:, None]
    for j, K in enumerate(kernel_sizes):
        w_kef = jnp.transpose(params[f"w{K}"], (1, 2, 0)).reshape(K * E, F)
        wconv = wconv.at[:K * E, j * F:(j + 1) * F].set(w_kef)
        bconv = bconv.at[0, j * F:(j + 1) * F].set(params[f"b{K}"][0])
        valid = (t_idx < (L - K + 1)).astype(jnp.float32)          # (L, 1)
        mask = mask.at[:, j * F:(j + 1) * F].set(jnp.broadcast_to(valid, (L, F)))

    # ---- pack FC weights into lane-padded tiles ------------------------------
    wfc_pad = jnp.zeros((filt_pad, out_pad), jnp.float32)
    wfc_pad = wfc_pad.at[:nK * F, :label_len].set(params["wfc"].T)
    bfc_pad = jnp.zeros((1, out_pad), jnp.float32)
    bfc_pad = bfc_pad.at[0, :label_len].set(params["bfc"][0])

    # ---- batch grid: pad B to a multiple of the batch tile -------------------
    TB = min(block_b, _round_up(B, 8))
    B_pad = _round_up(B, TB)
    if B_pad != B:
        x = jnp.pad(x, ((0, B_pad - B), (0, 0), (0, 0)))

    kernel = functools.partial(_textcnn_kernel, num_taps=Kmax)

    out_padded = pl.pallas_call(
        kernel,
        out_shape=jax.ShapeDtypeStruct((B_pad, out_pad), jnp.float32),
        grid=(B_pad // TB,),
        in_specs=[
            pl.BlockSpec((TB, L, E), lambda b: (b, 0, 0)),          # activations
            pl.BlockSpec((Kmax * E, filt_pad), lambda b: (0, 0)),   # packed conv W
            pl.BlockSpec((1, filt_pad), lambda b: (0, 0)),          # packed conv b
            pl.BlockSpec((filt_pad, out_pad), lambda b: (0, 0)),    # packed fc W
            pl.BlockSpec((1, out_pad), lambda b: (0, 0)),           # packed fc b
            pl.BlockSpec((L, filt_pad), lambda b: (0, 0)),          # validity mask
        ],
        out_specs=pl.BlockSpec((TB, out_pad), lambda b: (b, 0)),
        compiler_params=pltpu.CompilerParams(
            # batch axis is independent -> shard across v7x's two TensorCores
            dimension_semantics=("parallel",),
            # raise scoped VMEM (v5e default is 16 MiB); stays within v7x's
            # 64 MiB physical per-TC budget
            vmem_limit_bytes=64 * 1024 * 1024),
    )(x, wconv, bconv, wfc_pad, bfc_pad, mask)

    # slice padded batch rows and lane padding back to the true logits
    return out_padded[:B, :label_len]


# ------------------------------ init & reference -----------------------------
def init_params(key, *, kernel_sizes, num_filters, emb_size, label_len):
    keys = jax.random.split(key, 2 * len(kernel_sizes) + 2)
    params = {}
    for i, K in enumerate(kernel_sizes):
        params[f"w{K}"] = 0.1 * jax.random.normal(
            keys[2 * i], (num_filters, K, emb_size), jnp.float32)
        params[f"b{K}"] = 0.1 * jax.random.normal(
            keys[2 * i + 1], (1, num_filters), jnp.float32)
    params["wfc"] = 0.1 * jax.random.normal(
        keys[-2], (label_len, len(kernel_sizes) * num_filters), jnp.float32)
    params["bfc"] = 0.1 * jax.random.normal(
        keys[-1], (1, label_len), jnp.float32)
    return params


def textcnn_reference(x, params, *, kernel_sizes):
    """Pure-JAX reference matching the PyTorch semantics (eval mode)."""
    B, L, E = x.shape
    feats = []
    for K in kernel_sizes:
        w, b = params[f"w{K}"], params[f"b{K}"]          # (F,K,E), (1,F)
        Lout = L - K + 1
        windows = jnp.stack([x[:, t:t + K, :] for t in range(Lout)], axis=1)
        y = jnp.einsum("btke,fke->btf", windows, w) + b[0][None, None, :]
        y = jnp.maximum(y, 0.0)
        feats.append(jnp.max(y, axis=1))                  # (B, F)
    feat = jnp.concatenate(feats, axis=1)
    return feat @ params["wfc"].T + params["bfc"][0][None, :]


# ----------------------------------- main -------------------------------------
if __name__ == "__main__":
    cfg = CNNConfig
    B, L = 2, 16

    key = jax.random.PRNGKey(0)
    kx, kp = jax.random.split(key)
    x = jax.random.normal(kx, (B, L, cfg.emb_size), jnp.float32)
    params = init_params(kp,
                         kernel_sizes=cfg.kernel_size,
                         num_filters=cfg.num_filters,
                         emb_size=cfg.emb_size,
                         label_len=cfg.label_len)

    out = textcnn_forward(x, params,
                          kernel_sizes=cfg.kernel_size,
                          num_filters=cfg.num_filters,
                          label_len=cfg.label_len)
    out = jax.block_until_ready(out)

    ref = textcnn_reference(x, params, kernel_sizes=cfg.kernel_size)
    assert out.shape == (B, cfg.label_len)
    # tolerance accounts for the re-associated (deeper, packed) accumulation
    # order versus the einsum reference
    assert jnp.allclose(out, ref, atol=1e-3, rtol=1e-3), (out, ref)

    print("KERNEL_OK")
</pallas_src>

<mosaic_0001>
module attributes {stable_mosaic.version = 11 : i64} {
  func.func @_textcnn_kernel(%arg0: i32, %arg1: memref<8x16x32xf32, #tpu.memory_space<vmem>>, %arg2: memref<160x128xf32, #tpu.memory_space<vmem>>, %arg3: memref<1x128xf32, #tpu.memory_space<vmem>>, %arg4: memref<128x128xf32, #tpu.memory_space<vmem>>, %arg5: memref<1x128xf32, #tpu.memory_space<vmem>>, %arg6: memref<16x128xf32, #tpu.memory_space<vmem>>, %arg7: memref<8x128xf32, #tpu.memory_space<vmem>>) attributes {dimension_semantics = [#tpu.dimension_semantics<parallel>], iteration_bounds = array<i64: 1>, scalar_prefetch = 0 : i64, scratch_operands = 0 : i64, tpu.core_type = #tpu.core_type<tc>, window_params = [{transform_indices = @transform_0, window_bounds = array<i64: 8, 16, 32>}, {pipeline_mode = #tpu.pipeline_mode<synchronous>, transform_indices = @transform_1, window_bounds = array<i64: 160, 128>}, {pipeline_mode = #tpu.pipeline_mode<synchronous>, transform_indices = @transform_2, window_bounds = array<i64: 1, 128>}, {pipeline_mode = #tpu.pipeline_mode<synchronous>, transform_indices = @transform_3, window_bounds = array<i64: 128, 128>}, {pipeline_mode = #tpu.pipeline_mode<synchronous>, transform_indices = @transform_4, window_bounds = array<i64: 1, 128>}, {pipeline_mode = #tpu.pipeline_mode<synchronous>, transform_indices = @transform_5, window_bounds = array<i64: 16, 128>}, {transform_indices = @transform_6, window_bounds = array<i64: 8, 128>}]} {
    %c0 = arith.constant 0 : index
    %c0_0 = arith.constant 0 : index
    %c0_1 = arith.constant 0 : index
    %0 = vector.load %arg1[%c0, %c0_0, %c0_1] : memref<8x16x32xf32, #tpu.memory_space<vmem>>, vector<8x16x32xf32>
    %cst = arith.constant 0.000000e+00 : f32
    %1 = vector.broadcast %cst : f32 to vector<8x4x32xf32>
    %2 = tpu.concatenate %0, %1 in 1 : vector<8x16x32xf32>, vector<8x4x32xf32> -> vector<8x20x32xf32>
    %3 = vector.extract_strided_slice %2 {offsets = [0, 0, 0], sizes = [8, 16, 32], strides = [1, 1, 1]} : vector<8x20x32xf32> to vector<8x16x32xf32>
    %4 = vector.extract_strided_slice %2 {offsets = [0, 1, 0], sizes = [8, 16, 32], strides = [1, 1, 1]} : vector<8x20x32xf32> to vector<8x16x32xf32>
    %5 = vector.extract_strided_slice %2 {offsets = [0, 2, 0], sizes = [8, 16, 32], strides = [1, 1, 1]} : vector<8x20x32xf32> to vector<8x16x32xf32>
    %6 = vector.extract_strided_slice %2 {offsets = [0, 3, 0], sizes = [8, 16, 32], strides = [1, 1, 1]} : vector<8x20x32xf32> to vector<8x16x32xf32>
    %7 = vector.extract_strided_slice %2 {offsets = [0, 4, 0], sizes = [8, 16, 32], strides = [1, 1, 1]} : vector<8x20x32xf32> to vector<8x16x32xf32>
    %8 = tpu.concatenate %3, %4, %5, %6, %7 in 2 : vector<8x16x32xf32>, vector<8x16x32xf32>, vector<8x16x32xf32>, vector<8x16x32xf32>, vector<8x16x32xf32> -> vector<8x16x160xf32>
    %c0_2 = arith.constant 0 : index
    %c0_3 = arith.constant 0 : index
    %9 = vector.load %arg2[%c0_2, %c0_3] : memref<160x128xf32, #tpu.memory_space<vmem>>, vector<160x128xf32>
    %10 = vector.shape_cast %8 : vector<8x16x160xf32> to vector<128x160xf32>
    %cst_4 = arith.constant dense<0.000000e+00> : vector<128x128xf32>
    %11 = tpu.matmul %10, %9, %cst_4 {dimension_numbers = #tpu.dot_dimension_numbers<[1], [0], [0], [1], [0, 0, 1, 1], [], []>} : vector<128x160xf32>, vector<160x128xf32>, vector<128x128xf32> -> vector<128x128xf32>
    %c0_5 = arith.constant 0 : index
    %c0_6 = arith.constant 0 : index
    %12 = vector.load %arg3[%c0_5, %c0_6] : memref<1x128xf32, #tpu.memory_space<vmem>>, vector<1x128xf32>
    %13 = vector.broadcast %12 : vector<1x128xf32> to vector<128x128xf32>
    %14 = arith.addf %11, %13 : vector<128x128xf32>
    %cst_7 = arith.constant 0.000000e+00 : f32
    %15 = vector.broadcast %cst_7 : f32 to vector<128x128xf32>
    %16 = arith.maximumf %14, %15 : vector<128x128xf32>
    %17 = vector.shape_cast %16 : vector<128x128xf32> to vector<8x16x128xf32>
    %c0_8 = arith.constant 0 : index
    %c0_9 = arith.constant 0 : index
    %18 = vector.load %arg6[%c0_8, %c0_9] : memref<16x128xf32, #tpu.memory_space<vmem>>, vector<16x128xf32>
    %19 = vector.shape_cast %18 : vector<16x128xf32> to vector<1x16x128xf32>
    %20 = vector.broadcast %19 : vector<1x16x128xf32> to vector<8x16x128xf32>
    %21 = arith.mulf %17, %20 : vector<8x16x128xf32>
    %cst_10 = arith.constant dense<0xFF800000> : vector<8x128xf32>
    %22 = vector.multi_reduction <maximumf>, %21, %cst_10 [1] : vector<8x16x128xf32> to vector<8x128xf32>
    %c0_11 = arith.constant 0 : index
    %c0_12 = arith.constant 0 : index
    %23 = vector.load %arg4[%c0_11, %c0_12] : memref<128x128xf32, #tpu.memory_space<vmem>>, vector<128x128xf32>
    %cst_13 = arith.constant dense<0.000000e+00> : vector<8x128xf32>
    %24 = tpu.matmul %22, %23, %cst_13 {dimension_numbers = #tpu.dot_dimension_numbers<[1], [0], [0], [1], [0, 0, 1, 1], [], []>} : vector<8x128xf32>, vector<128x128xf32>, vector<8x128xf32> -> vector<8x128xf32>
    %c0_14 = arith.constant 0 : index
    %c0_15 = arith.constant 0 : index
    %25 = vector.load %arg5[%c0_14, %c0_15] : memref<1x128xf32, #tpu.memory_space<vmem>>, vector<1x128xf32>
    %26 = vector.broadcast %25 : vector<1x128xf32> to vector<8x128xf32>
    %27 = arith.addf %24, %26 : vector<8x128xf32>
    %c0_16 = arith.constant 0 : index
    %c0_17 = arith.constant 0 : index
    %28 = vector.load %arg7[%c0_16, %c0_17] : memref<8x128xf32, #tpu.memory_space<vmem>>, vector<8x128xf32>
    tpu.vector_store %arg7[%c0_16, %c0_17], %27 {strides = array<i32>} : memref<8x128xf32, #tpu.memory_space<vmem>>, vector<8x128xf32>,
    return
  }
  func.func @transform_0(%arg0: i32) -> (i32, i32, i32) {
    %c0_i32 = arith.constant 0 : i32
    %c0_i32_0 = arith.constant 0 : i32
    %c0_i32_1 = arith.constant 0 : i32
    return %arg0, %c0_i32, %c0_i32_0 : i32, i32, i32
  }
  func.func @transform_1(%arg0: i32) -> (i32, i32) {
    %c0_i32 = arith.constant 0 : i32
    %c0_i32_0 = arith.constant 0 : i32
    %c0_i32_1 = arith.constant 0 : i32
    return %c0_i32, %c0_i32_0 : i32, i32
  }
  func.func @transform_2(%arg0: i32) -> (i32, i32) {
    %c0_i32 = arith.constant 0 : i32
    %c0_i32_0 = arith.constant 0 : i32
    %c0_i32_1 = arith.constant 0 : i32
    return %c0_i32, %c0_i32_0 : i32, i32
  }
  func.func @transform_3(%arg0: i32) -> (i32, i32) {
    %c0_i32 = arith.constant 0 : i32
    %c0_i32_0 = arith.constant 0 : i32
    %c0_i32_1 = arith.constant 0 : i32
    return %c0_i32, %c0_i32_0 : i32, i32
  }
  func.func @transform_4(%arg0: i32) -> (i32, i32) {
    %c0_i32 = arith.constant 0 : i32
    %c0_i32_0 = arith.constant 0 : i32
    %c0_i32_1 = arith.constant 0 : i32
    return %c0_i32, %c0_i32_0 : i32, i32
  }
  func.func @transform_5(%arg0: i32) -> (i32, i32) {
    %c0_i32 = arith.constant 0 : i32
    %c0_i32_0 = arith.constant 0 : i32
    %c0_i32_1 = arith.constant 0 : i32
    return %c0_i32, %c0_i32_0 : i32, i32
  }
  func.func @transform_6(%arg0: i32) -> (i32, i32) {
    %c0_i32 = arith.constant 0 : i32
    %c0_i32_0 = arith.constant 0 : i32
    return %arg0, %c0_i32 : i32, i32
  }
}

</mosaic_0001>

<llo_original>
// kernel: tpu_custom_call.1
$region0: #{tpu_custom_call.1}
  #allocation0 [shape = 'u32[]', space=smem, size = 0x4, offset = 0x4, fixed_abs, tag = 'smem constant byte address 0x4 - core index']
  #allocation1 [shape = 'u32[72,128]{1,0:T(1,128)}', space=vmem, size = 0x9000, scoped, tag = 'internal scratch']
  %s0 = inlined_call_operand.hbm [shape: f32[8,16,32], index: 0, kind: input, shape index: {}]
  %s1 = inlined_call_operand.hbm [shape: f32[160,128], index: 1, kind: input, shape index: {}]
  %s2 = inlined_call_operand.vmem [shape: f32[1,128], index: 2, kind: input, shape index: {}]
  %s3 = inlined_call_operand.hbm [shape: f32[128,128], index: 3, kind: input, shape index: {}]
  %s4 = inlined_call_operand.vmem [shape: f32[1,128], index: 4, kind: input, shape index: {}]
  %s5 = inlined_call_operand.hbm [shape: f32[16,128], index: 5, kind: input, shape index: {}]
  %s6 = inlined_call_operand.hbm [shape: f32[8,128], index: 6, kind: output, shape index: {}]
  %s7 = sld [smem:[#allocation0]]
  $region50: #{tpu_custom_call.1} parent=0
    _
  %s9 = ssub.s32 1, %s7
  %s10 = scalar_select 0, %s9, %s7
  $region1: #{tpu_custom_call.1} parent=0
    #allocation2 [shape = 'u8[65536]{0}', space=vmem, size = 0x10000, scoped, tag = 'input window, operand 0, single buffered']
    #allocation3 [shape = 's32[1]{0}', space=sflag, size = 0x4, scoped, tag = 'scoped memory for tpu_custom_call.1']
    #allocation4 [shape = 's32[1]{0}', space=sflag, size = 0x4, scoped, tag = 'scoped memory for tpu_custom_call.1']
    #allocation5 [shape = 'u8[81920]{0}', space=vmem, size = 0x14000, scoped, tag = 'input window, operand 1, single buffered']
    #allocation6 [shape = 's32[1]{0}', space=sflag, size = 0x4, scoped, tag = 'scoped memory for tpu_custom_call.1']
    #allocation7 [shape = 'u8[65536]{0}', space=vmem, size = 0x10000, scoped, tag = 'input window, operand 3, single buffered']
    #allocation8 [shape = 'u8[8192]{0}', space=vmem, size = 0x2000, scoped, tag = 'input window, operand 5, single buffered']
    #allocation9 [shape = 's32[1]{0}', space=sflag, size = 0x4, scoped, tag = 'scoped memory for tpu_custom_call.1']
    #allocation10 [shape = 'u8[4096]{0}', space=vmem, size = 0x1000, scoped, tag = 'output window, operand 0, single buffered']
    %11 = vsyncpa [#allocation3], 0
    %12 = vsyncpa [#allocation6], 0
    %13 = vsyncpa [#allocation9], 0
    %14 = vsyncpa [#allocation4], 0
    // Predicated region
    $region2: #{tpu_custom_call.1} parent=1 // pred_check
      _
    $region3: #{tpu_custom_call.1} parent=1 // pred_check_branch
      %16 = sbr.rel (0) target = $region5
    $region4: #{tpu_custom_call.1} parent=1 // pred_region
      %18 = vsyncadd [#allocation3], 0
      %s19 = sshll.u32 %s0, 4
      %s20 = int_to_ptr.hbm [resolvable:$true] %s19
      %s21 = sshll.u32 [#allocation2], 4
      %s22 = int_to_ptr.vmem [resolvable:$true] %s21
      %27 = dma.hbm_to_vmem [thread:$0]  %s20, 2048, %s22, [#allocation3], 128, 128, 8
    $region5: #{tpu_custom_call.1} parent=1 // pred_fallthru
      _
    // Predicated region
    $region6: #{tpu_custom_call.1} parent=1 // pred_check
      _
    $region7: #{tpu_custom_call.1} parent=1 // pred_check_branch
      %29 = sbr.rel (0) target = $region9
    $region8: #{tpu_custom_call.1} parent=1 // pred_region
      %31 = vsyncadd [#allocation6], 0
      %s32 = sshll.u32 %s1, 4
      %s33 = int_to_ptr.hbm [resolvable:$true] %s32
      %s34 = sshll.u32 [#allocation5], 4
      %s35 = int_to_ptr.vmem [resolvable:$true] %s34
      %40 = dma.hbm_to_vmem [thread:$0]  %s33, 2560, %s35, [#allocation6], 128, 128, 8
    $region9: #{tpu_custom_call.1} parent=1 // pred_fallthru
      _
    // Predicated region
    $region10: #{tpu_custom_call.1} parent=1 // pred_check
      _
    $region11: #{tpu_custom_call.1} parent=1 // pred_check_branch
      %42 = sbr.rel (0) target = $region13
    $region12: #{tpu_custom_call.1} parent=1 // pred_region
      _
    $region13: #{tpu_custom_call.1} parent=1 // pred_fallthru
      _
    // Predicated region
    $region14: #{tpu_custom_call.1} parent=1 // pred_check
      _
    $region15: #{tpu_custom_call.1} parent=1 // pred_check_branch
      %44 = sbr.rel (0) target = $region17
    $region16: #{tpu_custom_call.1} parent=1 // pred_region
      %46 = vsyncadd [#allocation6], 0
      %s47 = sshll.u32 %s3, 4
      %s48 = int_to_ptr.hbm [resolvable:$true] %s47
      %s49 = sshll.u32 [#allocation7], 4
      %s50 = int_to_ptr.vmem [resolvable:$true] %s49
      %55 = dma.hbm_to_vmem [thread:$0]  %s48, 2048, %s50, [#allocation6], 128, 128, 8
    $region17: #{tpu_custom_call.1} parent=1 // pred_fallthru
      _
    // Predicated region
    $region18: #{tpu_custom_call.1} parent=1 // pred_check
      _
    $region19: #{tpu_custom_call.1} parent=1 // pred_check_branch
      %57 = sbr.rel (0) target = $region21
    $region20: #{tpu_custom_call.1} parent=1 // pred_region
      _
    $region21: #{tpu_custom_call.1} parent=1 // pred_fallthru
      _
    // Predicated region
    $region22: #{tpu_custom_call.1} parent=1 // pred_check
      _
    $region23: #{tpu_custom_call.1} parent=1 // pred_check_branch
      %59 = sbr.rel (0) target = $region25
    $region24: #{tpu_custom_call.1} parent=1 // pred_region
      %61 = vsyncadd [#allocation9], 0
      %s62 = sshll.u32 %s5, 4
      %s63 = int_to_ptr.hbm [resolvable:$true] %s62
      %s64 = sshll.u32 [#allocation8], 4
      %s65 = int_to_ptr.vmem [resolvable:$true] %s64
      %70 = dma.hbm_to_vmem [thread:$0]  %s63, 256, %s65, [#allocation9], 128, 128, 8
    $region25: #{tpu_custom_call.1} parent=1 // pred_fallthru
      _
    // Predicated region
    $region26: #{tpu_custom_call.1} parent=1 // pred_check
      _
    $region27: #{tpu_custom_call.1} parent=1 // pred_check_branch
      %72 = sbr.rel (0) target = $region29
    $region28: #{tpu_custom_call.1} parent=1 // pred_region
      %74 = dma.done [#allocation3], 2048
    $region29: #{tpu_custom_call.1} parent=1 // pred_fallthru
      _
    // Predicated region
    $region30: #{tpu_custom_call.1} parent=1 // pred_check
      _
    $region31: #{tpu_custom_call.1} parent=1 // pred_check_branch
      %76 = sbr.rel (0) target = $region33
    $region32: #{tpu_custom_call.1} parent=1 // pred_region
      %78 = dma.done [#allocation6], 2560
    $region33: #{tpu_custom_call.1} parent=1 // pred_fallthru
      _
    // Predicated region
    $region34: #{tpu_custom_call.1} parent=1 // pred_check
      _
    $region35: #{tpu_custom_call.1} parent=1 // pred_check_branch
      %80 = sbr.rel (0) target = $region37
    $region36: #{tpu_custom_call.1} parent=1 // pred_region
      %82 = dma.done [#allocation6], 2048
    $region37: #{tpu_custom_call.1} parent=1 // pred_fallthru
      _
    // Predicated region
    $region38: #{tpu_custom_call.1} parent=1 // pred_check
      _
    $region39: #{tpu_custom_call.1} parent=1 // pred_check_branch
      %84 = sbr.rel (0) target = $region41
    $region40: #{tpu_custom_call.1} parent=1 // pred_region
      %86 = dma.done [#allocation9], 256
    $region41: #{tpu_custom_call.1} parent=1 // pred_fallthru
      _
    %v87 = vld [vmem:[#allocation2] sm:$0xff]
    %v88 = vld [vmem:[#allocation2 + $0x8] sm:$0xff]
    %v89 = vld [vmem:[#allocation2 + $0x10] sm:$0xff]
    %v90 = vld [vmem:[#allocation2 + $0x18] sm:$0xff]
    %v91 = vld [vmem:[#allocation2 + $0x20] sm:$0xff]
    %v92 = vld [vmem:[#allocation2 + $0x28] sm:$0xff]
    %v93 = vld [vmem:[#allocation2 + $0x30] sm:$0xff]
    %v94 = vld [vmem:[#allocation2 + $0x38] sm:$0xff]
    %v95 = vld [vmem:[#allocation2 + $0x40] sm:$0xff]
    %v96 = vld [vmem:[#allocation2 + $0x48] sm:$0xff]
    %v97 = vld [vmem:[#allocation2 + $0x50] sm:$0xff]
    %v98 = vld [vmem:[#allocation2 + $0x58] sm:$0xff]
    %v99 = vld [vmem:[#allocation2 + $0x60] sm:$0xff]
    %v100 = vld [vmem:[#allocation2 + $0x68] sm:$0xff]
    %v101 = vld [vmem:[#allocation2 + $0x70] sm:$0xff]
    %v102 = vld [vmem:[#allocation2 + $0x78] sm:$0xff]
    %vm120 = vcmask 1046528
    %v121 = vrot.slane %v87, 1
    %v122 = vrot.slane %v88, 1
    %v123 = vsel %vm120, %v121, %v122
    %v124 = vrot.slane 0.0, 1
    %v125 = vsel %vm120, %v122, %v124
    %v126 = vrot.slane %v89, 1
    %v127 = vrot.slane %v90, 1
    %v128 = vsel %vm120, %v126, %v127
    %v129 = vsel %vm120, %v127, %v124
    %v130 = vrot.slane %v91, 1
    %v131 = vrot.slane %v92, 1
    %v132 = vsel %vm120, %v130, %v131
    %v133 = vsel %vm120, %v131, %v124
    %v134 = vrot.slane %v93, 1
    %v135 = vrot.slane %v94, 1
    %v136 = vsel %vm120, %v134, %v135
    %v137 = vsel %vm120, %v135, %v124
    %v138 = vrot.slane %v95, 1
    %v139 = vrot.slane %v96, 1
    %v140 = vsel %vm120, %v138, %v139
    %v141 = vsel %vm120, %v139, %v124
    %v142 = vrot.slane %v97, 1
    %v143 = vrot.slane %v98, 1
    %v144 = vsel %vm120, %v142, %v143
    %v145 = vsel %vm120, %v143, %v124
    %v146 = vrot.slane %v99, 1
    %v147 = vrot.slane %v100, 1
    %v148 = vsel %vm120, %v146, %v147
    %v149 = vsel %vm120, %v147, %v124
    %v150 = vrot.slane %v101, 1
    %v151 = vrot.slane %v102, 1
    %v152 = vsel %vm120, %v150, %v151
    %v153 = vsel %vm120, %v151, %v124
    %154 = vrot.lane.b32.xlu0 %v123, 32
    %v155 = vpop.permute.xlu0 %154
    %156 = vrot.lane.b32.xlu0 %v125, 32
    %v157 = vpop.permute.xlu0 %156
    %158 = vrot.lane.b32.xlu0 %v128, 32
    %v159 = vpop.permute.xlu0 %158
    %160 = vrot.lane.b32.xlu0 %v129, 32
    %v161 = vpop.permute.xlu0 %160
    %162 = vrot.lane.b32.xlu0 %v132, 32
    %v163 = vpop.permute.xlu0 %162
    %164 = vrot.lane.b32.xlu0 %v133, 32
    %v165 = vpop.permute.xlu0 %164
    %166 = vrot.lane.b32.xlu0 %v136, 32
    %v167 = vpop.permute.xlu0 %166
    %168 = vrot.lane.b32.xlu0 %v137, 32
    %v169 = vpop.permute.xlu0 %168
    %170 = vrot.lane.b32.xlu0 %v140, 32
    %v171 = vpop.permute.xlu0 %170
    %172 = vrot.lane.b32.xlu0 %v141, 32
    %v173 = vpop.permute.xlu0 %172
    %174 = vrot.lane.b32.xlu0 %v144, 32
    %v175 = vpop.permute.xlu0 %174
    %176 = vrot.lane.b32.xlu0 %v145, 32
    %v177 = vpop.permute.xlu0 %176
    %178 = vrot.lane.b32.xlu0 %v148, 32
    %v179 = vpop.permute.xlu0 %178
    %180 = vrot.lane.b32.xlu0 %v149, 32
    %v181 = vpop.permute.xlu0 %180
    %182 = vrot.lane.b32.xlu0 %v152, 32
    %v183 = vpop.permute.xlu0 %182
    %184 = vrot.lane.b32.xlu0 %v153, 32
    %v185 = vpop.permute.xlu0 %184
    %vm202 = vcmask 1045504
    %v203 = vrot.slane %v87, 2
    %v204 = vrot.slane %v88, 2
    %v205 = vsel %vm202, %v203, %v204
    %v206 = vrot.slane 0.0, 2
    %v207 = vsel %vm202, %v204, %v206
    %v208 = vrot.slane %v89, 2
    %v209 = vrot.slane %v90, 2
    %v210 = vsel %vm202, %v208, %v209
    %v211 = vsel %vm202, %v209, %v206
    %v212 = vrot.slane %v91, 2
    %v213 = vrot.slane %v92, 2
    %v214 = vsel %vm202, %v212, %v213
    %v215 = vsel %vm202, %v213, %v206
    %v216 = vrot.slane %v93, 2
    %v217 = vrot.slane %v94, 2
    %v218 = vsel %vm202, %v216, %v217
    %v219 = vsel %vm202, %v217, %v206
    %v220 = vrot.slane %v95, 2
    %v221 = vrot.slane %v96, 2
    %v222 = vsel %vm202, %v220, %v221
    %v223 = vsel %vm202, %v221, %v206
    %v224 = vrot.slane %v97, 2
    %v225 = vrot.slane %v98, 2
    %v226 = vsel %vm202, %v224, %v225
    %v227 = vsel %vm202, %v225, %v206
    %v228 = vrot.slane %v99, 2
    %v229 = vrot.slane %v100, 2
    %v230 = vsel %vm202, %v228, %v229
    %v231 = vsel %vm202, %v229, %v206
    %v232 = vrot.slane %v101, 2
    %v233 = vrot.slane %v102, 2
    %v234 = vsel %vm202, %v232, %v233
    %v235 = vsel %vm202, %v233, %v206
    %236 = vrot.lane.b32.xlu0 %v205, 64
    %v237 = vpop.permute.xlu0 %236
    %238 = vrot.lane.b32.xlu0 %v207, 64
    %v239 = vpop.permute.xlu0 %238
    %240 = vrot.lane.b32.xlu0 %v210, 64
    %v241 = vpop.permute.xlu0 %240
    %242 = vrot.lane.b32.xlu0 %v211, 64
    %v243 = vpop.permute.xlu0 %242
    %244 = vrot.lane.b32.xlu0 %v214, 64
    %v245 = vpop.permute.xlu0 %244
    %246 = vrot.lane.b32.xlu0 %v215, 64
    %v247 = vpop.permute.xlu0 %246
    %248 = vrot.lane.b32.xlu0 %v218, 64
    %v249 = vpop.permute.xlu0 %248
    %250 = vrot.lane.b32.xlu0 %v219, 64
    %v251 = vpop.permute.xlu0 %250
    %252 = vrot.lane.b32.xlu0 %v222, 64
    %v253 = vpop.permute.xlu0 %252
    %254 = vrot.lane.b32.xlu0 %v223, 64
    %v255 = vpop.permute.xlu0 %254
    %256 = vrot.lane.b32.xlu0 %v226, 64
    %v257 = vpop.permute.xlu0 %256
    %258 = vrot.lane.b32.xlu0 %v227, 64
    %v259 = vpop.permute.xlu0 %258
    %260 = vrot.lane.b32.xlu0 %v230, 64
    %v261 = vpop.permute.xlu0 %260
    %262 = vrot.lane.b32.xlu0 %v231, 64
    %v263 = vpop.permute.xlu0 %262
    %264 = vrot.lane.b32.xlu0 %v234, 64
    %v265 = vpop.permute.xlu0 %264
    %266 = vrot.lane.b32.xlu0 %v235, 64
    %v267 = vpop.permute.xlu0 %266
    %vm284 = vcmask 1044480
    %v285 = vrot.slane %v87, 3
    %v286 = vrot.slane %v88, 3
    %v287 = vsel %vm284, %v285, %v286
    %v288 = vrot.slane 0.0, 3
    %v289 = vsel %vm284, %v286, %v288
    %v290 = vrot.slane %v89, 3
    %v291 = vrot.slane %v90, 3
    %v292 = vsel %vm284, %v290, %v291
    %v293 = vsel %vm284, %v291, %v288
    %v294 = vrot.slane %v91, 3
    %v295 = vrot.slane %v92, 3
    %v296 = vsel %vm284, %v294, %v295
    %v297 = vsel %vm284, %v295, %v288
    %v298 = vrot.slane %v93, 3
    %v299 = vrot.slane %v94, 3
    %v300 = vsel %vm284, %v298, %v299
    %v301 = vsel %vm284, %v299, %v288
    %v302 = vrot.slane %v95, 3
    %v303 = vrot.slane %v96, 3
    %v304 = vsel %vm284, %v302, %v303
    %v305 = vsel %vm284, %v303, %v288
    %v306 = vrot.slane %v97, 3
    %v307 = vrot.slane %v98, 3
    %v308 = vsel %vm284, %v306, %v307
    %v309 = vsel %vm284, %v307, %v288
    %v310 = vrot.slane %v99, 3
    %v311 = vrot.slane %v100, 3
    %v312 = vsel %vm284, %v310, %v311
    %v313 = vsel %vm284, %v311, %v288
    %v314 = vrot.slane %v101, 3
    %v315 = vrot.slane %v102, 3
    %v316 = vsel %vm284, %v314, %v315
    %v317 = vsel %vm284, %v315, %v288
    %318 = vrot.lane.b32.xlu0 %v287, 96
    %v319 = vpop.permute.xlu0 %318
    %320 = vrot.lane.b32.xlu0 %v289, 96
    %v321 = vpop.permute.xlu0 %320
    %322 = vrot.lane.b32.xlu0 %v292, 96
    %v323 = vpop.permute.xlu0 %322
    %324 = vrot.lane.b32.xlu0 %v293, 96
    %v325 = vpop.permute.xlu0 %324
    %326 = vrot.lane.b32.xlu0 %v296, 96
    %v327 = vpop.permute.xlu0 %326
    %328 = vrot.lane.b32.xlu0 %v297, 96
    %v329 = vpop.permute.xlu0 %328
    %330 = vrot.lane.b32.xlu0 %v300, 96
    %v331 = vpop.permute.xlu0 %330
    %332 = vrot.lane.b32.xlu0 %v301, 96
    %v333 = vpop.permute.xlu0 %332
    %334 = vrot.lane.b32.xlu0 %v304, 96
    %v335 = vpop.permute.xlu0 %334
    %336 = vrot.lane.b32.xlu0 %v305, 96
    %v337 = vpop.permute.xlu0 %336
    %338 = vrot.lane.b32.xlu0 %v308, 96
    %v339 = vpop.permute.xlu0 %338
    %340 = vrot.lane.b32.xlu0 %v309, 96
    %v341 = vpop.permute.xlu0 %340
    %342 = vrot.lane.b32.xlu0 %v312, 96
    %v343 = vpop.permute.xlu0 %342
    %344 = vrot.lane.b32.xlu0 %v313, 96
    %v345 = vpop.permute.xlu0 %344
    %346 = vrot.lane.b32.xlu0 %v316, 96
    %v347 = vpop.permute.xlu0 %346
    %348 = vrot.lane.b32.xlu0 %v317, 96
    %v349 = vpop.permute.xlu0 %348
    %vm366 = vcmask 1043456
    %v367 = vrot.slane %v87, 4
    %v368 = vrot.slane %v88, 4
    %v369 = vsel %vm366, %v367, %v368
    %v370 = vrot.slane 0.0, 4
    %v371 = vsel %vm366, %v368, %v370
    %v372 = vrot.slane %v89, 4
    %v373 = vrot.slane %v90, 4
    %v374 = vsel %vm366, %v372, %v373
    %v375 = vsel %vm366, %v373, %v370
    %v376 = vrot.slane %v91, 4
    %v377 = vrot.slane %v92, 4
    %v378 = vsel %vm366, %v376, %v377
    %v379 = vsel %vm366, %v377, %v370
    %v380 = vrot.slane %v93, 4
    %v381 = vrot.slane %v94, 4
    %v382 = vsel %vm366, %v380, %v381
    %v383 = vsel %vm366, %v381, %v370
    %v384 = vrot.slane %v95, 4
    %v385 = vrot.slane %v96, 4
    %v386 = vsel %vm366, %v384, %v385
    %v387 = vsel %vm366, %v385, %v370
    %v388 = vrot.slane %v97, 4
    %v389 = vrot.slane %v98, 4
    %v390 = vsel %vm366, %v388, %v389
    %v391 = vsel %vm366, %v389, %v370
    %v392 = vrot.slane %v99, 4
    %v393 = vrot.slane %v100, 4
    %v394 = vsel %vm366, %v392, %v393
    %v395 = vsel %vm366, %v393, %v370
    %v396 = vrot.slane %v101, 4
    %v397 = vrot.slane %v102, 4
    %v398 = vsel %vm366, %v396, %v397
    %v399 = vsel %vm366, %v397, %v370
    %vm400 = vcmask 261120
    %v401 = vsel %vm400, %v87, %v155
    %v402 = vsel %vm400, %v88, %v157
    %v403 = vsel %vm400, %v89, %v159
    %v404 = vsel %vm400, %v90, %v161
    %v405 = vsel %vm400, %v91, %v163
    %v406 = vsel %vm400, %v92, %v165
    %v407 = vsel %vm400, %v93, %v167
    %v408 = vsel %vm400, %v94, %v169
    %v409 = vsel %vm400, %v95, %v171
    %v410 = vsel %vm400, %v96, %v173
    %v411 = vsel %vm400, %v97, %v175
    %v412 = vsel %vm400, %v98, %v177
    %v413 = vsel %vm400, %v99, %v179
    %v414 = vsel %vm400, %v100, %v181
    %v415 = vsel %vm400, %v101, %v183
    %v416 = vsel %vm400, %v102, %v185
    %vm417 = vcmask 523264
    %v418 = vsel %vm417, %v401, %v237
    %v419 = vsel %vm417, %v402, %v239
    %v420 = vsel %vm417, %v403, %v241
    %v421 = vsel %vm417, %v404, %v243
    %v422 = vsel %vm417, %v405, %v245
    %v423 = vsel %vm417, %v406, %v247
    %v424 = vsel %vm417, %v407, %v249
    %v425 = vsel %vm417, %v408, %v251
    %v426 = vsel %vm417, %v409, %v253
    %v427 = vsel %vm417, %v410, %v255
    %v428 = vsel %vm417, %v411, %v257
    %v429 = vsel %vm417, %v412, %v259
    %v430 = vsel %vm417, %v413, %v261
    %v431 = vsel %vm417, %v414, %v263
    %v432 = vsel %vm417, %v415, %v265
    %v433 = vsel %vm417, %v416, %v267
    %vm434 = vcmask 785408
    %v435 = vsel %vm434, %v418, %v319
    %v436 = vsel %vm434, %v419, %v321
    %v437 = vsel %vm434, %v420, %v323
    %v438 = vsel %vm434, %v421, %v325
    %v439 = vsel %vm434, %v422, %v327
    %v440 = vsel %vm434, %v423, %v329
    %v441 = vsel %vm434, %v424, %v331
    %v442 = vsel %vm434, %v425, %v333
    %v443 = vsel %vm434, %v426, %v335
    %v444 = vsel %vm434, %v427, %v337
    %v445 = vsel %vm434, %v428, %v339
    %v446 = vsel %vm434, %v429, %v341
    %v447 = vsel %vm434, %v430, %v343
    %v448 = vsel %vm434, %v431, %v345
    %v449 = vsel %vm434, %v432, %v347
    %v450 = vsel %vm434, %v433, %v349
    %v451 = vld [vmem:[#allocation5] sm:$0xff]
    %v452 = vld [vmem:[#allocation5 + $0x8] sm:$0xff]
    %v453 = vld [vmem:[#allocation5 + $0x10] sm:$0xff]
    %v454 = vld [vmem:[#allocation5 + $0x18] sm:$0xff]
    %v455 = vld [vmem:[#allocation5 + $0x20] sm:$0xff]
    %v456 = vld [vmem:[#allocation5 + $0x28] sm:$0xff]
    %v457 = vld [vmem:[#allocation5 + $0x30] sm:$0xff]
    %v458 = vld [vmem:[#allocation5 + $0x38] sm:$0xff]
    %v459 = vld [vmem:[#allocation5 + $0x40] sm:$0xff]
    %v460 = vld [vmem:[#allocation5 + $0x48] sm:$0xff]
    %v461 = vld [vmem:[#allocation5 + $0x50] sm:$0xff]
    %v462 = vld [vmem:[#allocation5 + $0x58] sm:$0xff]
    %v463 = vld [vmem:[#allocation5 + $0x60] sm:$0xff]
    %v464 = vld [vmem:[#allocation5 + $0x68] sm:$0xff]
    %v465 = vld [vmem:[#allocation5 + $0x70] sm:$0xff]
    %v466 = vld [vmem:[#allocation5 + $0x78] sm:$0xff]
    %v467 = vld [vmem:[#allocation5 + $0x80] sm:$0xff]
    %v468 = vld [vmem:[#allocation5 + $0x88] sm:$0xff]
    %v469 = vld [vmem:[#allocation5 + $0x90] sm:$0xff]
    %v470 = vld [vmem:[#allocation5 + $0x98] sm:$0xff]
    %v471 = vld [vmem:[%s2] sm:$0x1]
    %v473 = vperm.slane %v471, 0
    %v475 = vsel %vm400, %v369, 0
    %v477 = vsel %vm400, %v371, 0
    %v479 = vsel %vm400, %v374, 0
    %v481 = vsel %vm400, %v375, 0
    %v483 = vsel %vm400, %v378, 0
    %v485 = vsel %vm400, %v379, 0
    %v487 = vsel %vm400, %v382, 0
    %v489 = vsel %vm400, %v383, 0
    %v491 = vsel %vm400, %v386, 0
    %v493 = vsel %vm400, %v387, 0
    %v495 = vsel %vm400, %v390, 0
    %v497 = vsel %vm400, %v391, 0
    %v499 = vsel %vm400, %v394, 0
    %v501 = vsel %vm400, %v395, 0
    %v503 = vsel %vm400, %v398, 0
    %v505 = vsel %vm400, %v399, 0
    %507 = vmatpush.msra.mxu0 %v466
    %508 = vmatpush.msra.mxu0 %v465
    %509 = vmatpush.msra.mxu0 %v464
    %510 = vmatpush.msra.mxu0 %v463
    %511 = vmatpush.msra.mxu0 %v462
    %512 = vmatpush.msra.mxu0 %v461
    %513 = vmatpush.msra.mxu0 %v460
    %514 = vmatpush.msra.mxu0 %v459
    %515 = vmatpush.msra.mxu0 %v458
    %516 = vmatpush.msra.mxu0 %v457
    %517 = vmatpush.msra.mxu0 %v456
    %518 = vmatpush.msra.mxu0 %v455
    %519 = vmatpush.msra.mxu0 %v454
    %520 = vmatpush.msra.mxu0 %v453
    %521 = vmatpush.msra.mxu0 %v452
    %522 = vmatpush.msra.mxu0 %v451
    %523 = vmatmul.f32.gmra.mxu0 %v435
    %v524 = vpop.f32.mrf.mxu0
    %v525 = vadd.f32 %v473, %v524
    %526 = vmatmul.f32.gmra.mxu0 %v436
    %v527 = vpop.f32.mrf.mxu0
    %v528 = vadd.f32 %v473, %v527
    %529 = vmatmul.f32.gmra.mxu0 %v437
    %v530 = vpop.f32.mrf.mxu0
    %v531 = vadd.f32 %v473, %v530
    %532 = vmatmul.f32.gmra.mxu0 %v438
    %v533 = vpop.f32.mrf.mxu0
    %v534 = vadd.f32 %v473, %v533
    %535 = vmatmul.f32.gmra.mxu0 %v439
    %v536 = vpop.f32.mrf.mxu0
    %v537 = vadd.f32 %v473, %v536
    %538 = vmatmul.f32.gmra.mxu0 %v440
    %v539 = vpop.f32.mrf.mxu0
    %v540 = vadd.f32 %v473, %v539
    %541 = vmatmul.f32.gmra.mxu0 %v441
    %v542 = vpop.f32.mrf.mxu0
    %v543 = vadd.f32 %v473, %v542
    %544 = vmatmul.f32.gmra.mxu0 %v442
    %v545 = vpop.f32.mrf.mxu0
    %v546 = vadd.f32 %v473, %v545
    %547 = vmatmul.f32.gmra.mxu0 %v443
    %v548 = vpop.f32.mrf.mxu0
    %v549 = vadd.f32 %v473, %v548
    %550 = vmatmul.f32.gmra.mxu0 %v444
    %v551 = vpop.f32.mrf.mxu0
    %v552 = vadd.f32 %v473, %v551
    %553 = vmatmul.f32.gmra.mxu0 %v445
    %v554 = vpop.f32.mrf.mxu0
    %v555 = vadd.f32 %v473, %v554
    %556 = vmatmul.f32.gmra.mxu0 %v446
    %v557 = vpop.f32.mrf.mxu0
    %v558 = vadd.f32 %v473, %v557
    %559 = vmatmul.f32.gmra.mxu0 %v447
    %v560 = vpop.f32.mrf.mxu0
    %v561 = vadd.f32 %v473, %v560
    %562 = vmatmul.f32.gmra.mxu0 %v448
    %v563 = vpop.f32.mrf.mxu0
    %v564 = vadd.f32 %v473, %v563
    %565 = vmatmul.f32.gmra.mxu0 %v449
    %v566 = vpop.f32.mrf.mxu0
    %v567 = vadd.f32 %v473, %v566
    %568 = vmatmul.f32.gmra.mxu0 %v450
    %v569 = vpop.f32.mrf.mxu0
    %v570 = vadd.f32 %v473, %v569
    %571 = vdwg.mxu0
    %572 = vmatpush.msra.mxu0 0.0
    %573 = vmatpush.msra.mxu0 0.0
    %574 = vmatpush.msra.mxu0 0.0
    %575 = vmatpush.msra.mxu0 0.0
    %576 = vmatpush.msra.mxu0 0.0
    %577 = vmatpush.msra.mxu0 0.0
    %578 = vmatpush.msra.mxu0 0.0
    %579 = vmatpush.msra.mxu0 0.0
    %580 = vmatpush.msra.mxu0 0.0
    %581 = vmatpush.msra.mxu0 0.0
    %582 = vmatpush.msra.mxu0 0.0
    %583 = vmatpush.msra.mxu0 0.0
    %584 = vmatpush.msra.mxu0 %v470
    %585 = vmatpush.msra.mxu0 %v469
    %586 = vmatpush.msra.mxu0 %v468
    %587 = vmatpush.msra.mxu0 %v467
    %588 = vmatmul.f32.gmra.mxu0 %v475
    %v589 = vpop.f32.mrf.mxu0
    %v590 = vadd.f32 %v525, %v589
    %591 = vmatmul.f32.gmra.mxu0 %v477
    %v592 = vpop.f32.mrf.mxu0
    %v593 = vadd.f32 %v528, %v592
    %594 = vmatmul.f32.gmra.mxu0 %v479
    %v595 = vpop.f32.mrf.mxu0
    %v596 = vadd.f32 %v531, %v595
    %597 = vmatmul.f32.gmra.mxu0 %v481
    %v598 = vpop.f32.mrf.mxu0
    %v599 = vadd.f32 %v534, %v598
    %600 = vmatmul.f32.gmra.mxu0 %v483
    %v601 = vpop.f32.mrf.mxu0
    %v602 = vadd.f32 %v537, %v601
    %603 = vmatmul.f32.gmra.mxu0 %v485
    %v604 = vpop.f32.mrf.mxu0
    %v605 = vadd.f32 %v540, %v604
    %606 = vmatmul.f32.gmra.mxu0 %v487
    %v607 = vpop.f32.mrf.mxu0
    %v608 = vadd.f32 %v543, %v607
    %609 = vmatmul.f32.gmra.mxu0 %v489
    %v610 = vpop.f32.mrf.mxu0
    %v611 = vadd.f32 %v546, %v610
    %612 = vmatmul.f32.gmra.mxu0 %v491
    %v613 = vpop.f32.mrf.mxu0
    %v614 = vadd.f32 %v549, %v613
    %615 = vmatmul.f32.gmra.mxu0 %v493
    %v616 = vpop.f32.mrf.mxu0
    %v617 = vadd.f32 %v552, %v616
    %618 = vmatmul.f32.gmra.mxu0 %v495
    %v619 = vpop.f32.mrf.mxu0
    %v620 = vadd.f32 %v555, %v619
    %621 = vmatmul.f32.gmra.mxu0 %v497
    %v622 = vpop.f32.mrf.mxu0
    %v623 = vadd.f32 %v558, %v622
    %624 = vmatmul.f32.gmra.mxu0 %v499
    %v625 = vpop.f32.mrf.mxu0
    %v626 = vadd.f32 %v561, %v625
    %627 = vmatmul.f32.gmra.mxu0 %v501
    %v628 = vpop.f32.mrf.mxu0
    %v629 = vadd.f32 %v564, %v628
    %630 = vmatmul.f32.gmra.mxu0 %v503
    %v631 = vpop.f32.mrf.mxu0
    %v632 = vadd.f32 %v567, %v631
    %633 = vmatmul.f32.gmra.mxu0 %v505
    %v634 = vpop.f32.mrf.mxu0
    %v635 = vadd.f32 %v570, %v634
    %636 = vdwg.mxu0
    %v637 = vmax.f32 %v590, 0.0
    %v638 = vmax.f32 %v593, 0.0
    %v639 = vmax.f32 %v596, 0.0
    %v640 = vmax.f32 %v599, 0.0
    %v641 = vmax.f32 %v602, 0.0
    %v642 = vmax.f32 %v605, 0.0
    %v643 = vmax.f32 %v608, 0.0
    %v644 = vmax.f32 %v611, 0.0
    %v645 = vmax.f32 %v614, 0.0
    %v646 = vmax.f32 %v617, 0.0
    %v647 = vmax.f32 %v620, 0.0
    %v648 = vmax.f32 %v623, 0.0
    %v649 = vmax.f32 %v626, 0.0
    %v650 = vmax.f32 %v629, 0.0
    %v651 = vmax.f32 %v632, 0.0
    %v652 = vmax.f32 %v635, 0.0
    %v653 = vld [vmem:[#allocation8] sm:$0xff]
    %v654 = vld [vmem:[#allocation8 + $0x8] sm:$0xff]
    %v655 = vmul.f32 %v637, %v653
    %v656 = vmul.f32 %v638, %v654
    %v657 = vmul.f32 %v639, %v653
    %v658 = vmul.f32 %v640, %v654
    %v659 = vmul.f32 %v641, %v653
    %v660 = vmul.f32 %v642, %v654
    %v661 = vmul.f32 %v643, %v653
    %v662 = vmul.f32 %v644, %v654
    %v663 = vmul.f32 %v645, %v653
    %v664 = vmul.f32 %v646, %v654
    %v665 = vmul.f32 %v647, %v653
    %v666 = vmul.f32 %v648, %v654
    %v667 = vmul.f32 %v649, %v653
    %v668 = vmul.f32 %v650, %v654
    %v669 = vmul.f32 %v651, %v653
    %v670 = vmul.f32 %v652, %v654
    %v671 = vmax.f32 %v655, %v656
    %v672 = vrot.slane %v671, 4
    %v673 = vmax.f32 %v671, %v672
    %v674 = vrot.slane %v673, 2
    %v675 = vmax.f32 %v673, %v674
    %v676 = vrot.slane %v675, 1
    %v677 = vmax.f32 %v675, %v676
    %v678 = vmax.f32 %v657, %v658
    %v679 = vrot.slane %v678, 4
    %v680 = vmax.f32 %v678, %v679
    %v681 = vrot.slane %v680, 2
    %v682 = vmax.f32 %v680, %v681
    %v683 = vrot.slane %v682, 1
    %v684 = vmax.f32 %v682, %v683
    %v685 = vmax.f32 %v659, %v660
    %v686 = vrot.slane %v685, 4
    %v687 = vmax.f32 %v685, %v686
    %v688 = vrot.slane %v687, 2
    %v689 = vmax.f32 %v687, %v688
    %v690 = vrot.slane %v689, 1
    %v691 = vmax.f32 %v689, %v690
    %v692 = vmax.f32 %v661, %v662
    %v693 = vrot.slane %v692, 4
    %v694 = vmax.f32 %v692, %v693
    %v695 = vrot.slane %v694, 2
    %v696 = vmax.f32 %v694, %v695
    %v697 = vrot.slane %v696, 1
    %v698 = vmax.f32 %v696, %v697
    %v699 = vmax.f32 %v663, %v664
    %v700 = vrot.slane %v699, 4
    %v701 = vmax.f32 %v699, %v700
    %v702 = vrot.slane %v701, 2
    %v703 = vmax.f32 %v701, %v702
    %v704 = vrot.slane %v703, 1
    %v705 = vmax.f32 %v703, %v704
    %v706 = vmax.f32 %v665, %v666
    %v707 = vrot.slane %v706, 4
    %v708 = vmax.f32 %v706, %v707
    %v709 = vrot.slane %v708, 2
    %v710 = vmax.f32 %v708, %v709
    %v711 = vrot.slane %v710, 1
    %v712 = vmax.f32 %v710, %v711
    %v713 = vmax.f32 %v667, %v668
    %v714 = vrot.slane %v713, 4
    %v715 = vmax.f32 %v713, %v714
    %v716 = vrot.slane %v715, 2
    %v717 = vmax.f32 %v715, %v716
    %v718 = vrot.slane %v717, 1
    %v719 = vmax.f32 %v717, %v718
    %v720 = vmax.f32 %v669, %v670
    %v721 = vrot.slane %v720, 4
    %v722 = vmax.f32 %v720, %v721
    %v723 = vrot.slane %v722, 2
    %v724 = vmax.f32 %v722, %v723
    %v725 = vrot.slane %v724, 1
    %v726 = vmax.f32 %v724, %v725
    %v727 = vld [vmem:[#allocation7] sm:$0xff]
    %v728 = vld [vmem:[#allocation7 + $0x8] sm:$0xff]
    %v729 = vld [vmem:[#allocation7 + $0x10] sm:$0xff]
    %v730 = vld [vmem:[#allocation7 + $0x18] sm:$0xff]
    %v731 = vld [vmem:[#allocation7 + $0x20] sm:$0xff]
    %v732 = vld [vmem:[#allocation7 + $0x28] sm:$0xff]
    %v733 = vld [vmem:[#allocation7 + $0x30] sm:$0xff]
    %v734 = vld [vmem:[#allocation7 + $0x38] sm:$0xff]
    %v735 = vld [vmem:[#allocation7 + $0x40] sm:$0xff]
    %v736 = vld [vmem:[#allocation7 + $0x48] sm:$0xff]
    %v737 = vld [vmem:[#allocation7 + $0x50] sm:$0xff]
    %v738 = vld [vmem:[#allocation7 + $0x58] sm:$0xff]
    %v739 = vld [vmem:[#allocation7 + $0x60] sm:$0xff]
    %v740 = vld [vmem:[#allocation7 + $0x68] sm:$0xff]
    %v741 = vld [vmem:[#allocation7 + $0x70] sm:$0xff]
    %v742 = vld [vmem:[#allocation7 + $0x78] sm:$0xff]
    %v743 = vld [vmem:[%s4] sm:$0x1]
    %v745 = vperm.slane %v743, 0
    %vm755 = vcmask 1041409
    %v756 = vsel %vm755, %v684, %v677
    %vm757 = vcmask 1042434
    %v758 = vsel %vm757, %v691, %v756
    %vm759 = vcmask 1043459
    %v760 = vsel %vm759, %v698, %v758
    %vm761 = vcmask 1044484
    %v762 = vsel %vm761, %v705, %v760
    %vm763 = vcmask 1045509
    %v764 = vsel %vm763, %v712, %v762
    %vm765 = vcmask 1046534
    %v766 = vsel %vm765, %v719, %v764
    %vm767 = vcmask 1047559
    %v768 = vsel %vm767, %v726, %v766
    %770 = vmatpush.msra.mxu0 %v742
    %771 = vmatpush.msra.mxu0 %v741
    %772 = vmatpush.msra.mxu0 %v740
    %773 = vmatpush.msra.mxu0 %v739
    %774 = vmatpush.msra.mxu0 %v738
    %775 = vmatpush.msra.mxu0 %v737
    %776 = vmatpush.msra.mxu0 %v736
    %777 = vmatpush.msra.mxu0 %v735
    %778 = vmatpush.msra.mxu0 %v734
    %779 = vmatpush.msra.mxu0 %v733
    %780 = vmatpush.msra.mxu0 %v732
    %781 = vmatpush.msra.mxu0 %v731
    %782 = vmatpush.msra.mxu0 %v730
    %783 = vmatpush.msra.mxu0 %v729
    %784 = vmatpush.msra.mxu0 %v728
    %785 = vmatpush.msra.mxu0 %v727
    %786 = vmatmul.f32.gmra.mxu0 %v768
    %v787 = vpop.f32.mrf.mxu0
    %v788 = vadd.f32 %v745, %v787
    %789 = vdwg.mxu0
    %790 = vst [vmem:[#allocation10] sm:$0xff] %v788
    // Predicated region
    $region42: #{tpu_custom_call.1} parent=1 // pred_check
      _
    $region43: #{tpu_custom_call.1} parent=1 // pred_check_branch
      %792 = sbr.rel (0) target = $region45
    $region44: #{tpu_custom_call.1} parent=1 // pred_region
      %794 = vsyncadd [#allocation4], 0
      %s796 = sshll.u32 [#allocation10], 4
      %s797 = int_to_ptr.vmem [resolvable:$true] %s796
      %s798 = sshll.u32 %s6, 4
      %s799 = int_to_ptr.hbm [resolvable:$true] %s798
      %801 = dma.vmem_to_hbm [thread:$0]  %s797, 128, %s799, [#allocation4]
    $region45: #{tpu_custom_call.1} parent=1 // pred_fallthru
      _
    // Predicated region
    $region46: #{tpu_custom_call.1} parent=1 // pred_check
      _
    $region47: #{tpu_custom_call.1} parent=1 // pred_check_branch
      %803 = sbr.rel (0) target = $region49
    $region48: #{tpu_custom_call.1} parent=1 // pred_region
      %805 = dma.done [#allocation4], 128
    $region49: #{tpu_custom_call.1} parent=1 // pred_fallthru
      _
    %806 = vsyncpa [#allocation3], 1
    %807 = vsyncpa [#allocation6], 1
    %808 = vsyncpa [#allocation9], 1
    %809 = vsyncpa [#allocation4], 1

</llo_original>
